<compile_context>
chip_gen: v7x
topology: tpu7x:2x2x1
jax: 0.10.0
libtpu: 0.0.40
codegen_flags: <defaults>
</compile_context>

<pallas_src>
import functools

import jax
import jax.numpy as jnp
from jax.experimental import pallas as pl
from jax.experimental.pallas import tpu as pltpu


def _round_up(x, m):
    return ((x + m - 1) // m) * m


def mmc_kernel(x_ref, w_ref, b_ref, feat_ref, bonus_ref, *, inv_hidden):
    # x_ref:   [TILE_B, K_pad]  bf16
    # w_ref:   [K_pad,  H_pad]  bf16
    # b_ref:   [1,      H_pad]  f32
    # feat_ref / bonus_ref: [TILE_B, H_pad] f32 (lane-dense output slabs)
    feat = jnp.dot(x_ref[...], w_ref[...],
                   preferred_element_type=jnp.float32)     # single MXU pass
    feat = feat + b_ref[...]                                # f32 bias add
    feat_ref[...] = feat

    # Padded hidden columns are exactly zero (zero-padded weights & bias), so
    # summing over H_pad equals summing over the real hidden size; divide by
    # the real hidden to get the mean.
    bonus = jnp.sum(feat * feat, axis=-1, keepdims=True) * inv_hidden
    # Broadcast to a full 128-lane slab so the store is unmasked/lane-dense.
    bonus_ref[...] = jnp.broadcast_to(bonus, bonus_ref.shape)


def mmc_forward(obs_nchw, actions, w_obs, w_act, b, *, tile_b=128):
    B = obs_nchw.shape[0]
    d_obs = obs_nchw.shape[1] * obs_nchw.shape[2] * obs_nchw.shape[3]
    a_dim = actions.shape[1]
    hidden = w_obs.shape[1]

    # --- Fuse the two matmuls: x = [obs_flat | actions], w = [w_obs ; w_act] ---
    obs_flat = obs_nchw.reshape(B, d_obs)                   # row-major, == .view
    x = jnp.concatenate([obs_flat, actions], axis=1)        # [B, K]
    w = jnp.concatenate([w_obs, w_act], axis=0)             # [K, hidden]

    # --- Pad to TPU-friendly shapes (lane=128; sublane=16 for bf16) ---
    K = d_obs + a_dim
    K_pad = _round_up(K, 128)
    H_pad = _round_up(hidden, 128)
    TILE_B = tile_b if B >= tile_b else _round_up(B, 16)
    B_pad = _round_up(B, TILE_B)

    x = jnp.pad(x, ((0, B_pad - B), (0, K_pad - K))).astype(jnp.bfloat16)
    w = jnp.pad(w, ((0, K_pad - K), (0, H_pad - hidden))).astype(jnp.bfloat16)
    b_p = jnp.pad(b.reshape(1, hidden).astype(jnp.float32),
                  ((0, 0), (0, H_pad - hidden)))

    grid = (B_pad // TILE_B,)
    kernel = functools.partial(mmc_kernel, inv_hidden=1.0 / float(hidden))

    flops = 2 * B_pad * K_pad * H_pad
    bytes_accessed = (x.size * 2 + w.size * 2 + b_p.size * 4
                      + 2 * B_pad * H_pad * 4)

    feat_full, bonus_full = pl.pallas_call(
        kernel,
        out_shape=(
            jax.ShapeDtypeStruct((B_pad, H_pad), jnp.float32),
            jax.ShapeDtypeStruct((B_pad, H_pad), jnp.float32),
        ),
        grid=grid,
        in_specs=[
            pl.BlockSpec((TILE_B, K_pad), lambda i: (i, 0)),   # batch-tiled x
            pl.BlockSpec((K_pad, H_pad), lambda i: (0, 0)),    # weights resident
            pl.BlockSpec((1, H_pad), lambda i: (0, 0)),        # bias resident
        ],
        out_specs=(
            pl.BlockSpec((TILE_B, H_pad), lambda i: (i, 0)),
            pl.BlockSpec((TILE_B, H_pad), lambda i: (i, 0)),
        ),
        compiler_params=pltpu.CompilerParams(
            dimension_semantics=("parallel",),     # shard batch across v7x TCs
            vmem_limit_bytes=48 << 20,             # v7x-safe (64 MiB physical)
        ),
        cost_estimate=pl.CostEstimate(
            flops=flops, transcendentals=0, bytes_accessed=bytes_accessed),
    )(x, w, b_p)

    feat = feat_full[:B, :hidden]
    bonus = bonus_full[:B, :1]
    return feat, bonus


if __name__ == "__main__":
    # Small shapes consistent with MMC(image_shape=(C,H,W), action_size=A).
    B, C, H, W = 2, 4, 16, 16
    action_size = 8
    hidden = 32
    d_obs = C * H * W

    key = jax.random.PRNGKey(0)
    k_obs, k_act, k_wobs, k_wact = jax.random.split(key, 4)

    observations = jax.random.normal(k_obs, (B, C, H, W), dtype=jnp.float32)
    actions = jax.random.normal(k_act, (B, action_size), dtype=jnp.float32)

    # Deterministic synthetic parameters (no checkpoint load).
    w_obs = jax.random.normal(k_wobs, (d_obs, hidden), dtype=jnp.float32) * 0.02
    w_act = jax.random.normal(k_wact, (action_size, hidden), dtype=jnp.float32) * 0.1
    b = jnp.zeros((1, hidden), dtype=jnp.float32)

    feat, bonus = mmc_forward(observations, actions, w_obs, w_act, b)
    jax.block_until_ready((feat, bonus))

    assert feat.shape == (B, hidden)
    assert bonus.shape == (B, 1)
    print("KERNEL_OK")
</pallas_src>

<mosaic_0001>
module attributes {stable_mosaic.version = 11 : i64} {
  func.func @mmc_kernel(%arg0: i32, %arg1: memref<16x1152xbf16, #tpu.memory_space<vmem>>, %arg2: memref<1152x128xbf16, #tpu.memory_space<vmem>>, %arg3: memref<1x128xf32, #tpu.memory_space<vmem>>, %arg4: memref<16x128xf32, #tpu.memory_space<vmem>>, %arg5: memref<16x128xf32, #tpu.memory_space<vmem>>) attributes {dimension_semantics = [#tpu.dimension_semantics<parallel>], iteration_bounds = array<i64: 1>, scalar_prefetch = 0 : i64, scratch_operands = 0 : i64, tpu.core_type = #tpu.core_type<tc>, window_params = [{transform_indices = @transform_0, window_bounds = array<i64: 16, 1152>}, {pipeline_mode = #tpu.pipeline_mode<synchronous>, transform_indices = @transform_1, window_bounds = array<i64: 1152, 128>}, {pipeline_mode = #tpu.pipeline_mode<synchronous>, transform_indices = @transform_2, window_bounds = array<i64: 1, 128>}, {transform_indices = @transform_3, window_bounds = array<i64: 16, 128>}, {transform_indices = @transform_4, window_bounds = array<i64: 16, 128>}]} {
    %c0 = arith.constant 0 : index
    %c0_0 = arith.constant 0 : index
    %0 = vector.load %arg1[%c0, %c0_0] : memref<16x1152xbf16, #tpu.memory_space<vmem>>, vector<16x1152xbf16>
    %c0_1 = arith.constant 0 : index
    %c0_2 = arith.constant 0 : index
    %1 = vector.load %arg2[%c0_1, %c0_2] : memref<1152x128xbf16, #tpu.memory_space<vmem>>, vector<1152x128xbf16>
    %cst = arith.constant dense<0.000000e+00> : vector<16x128xf32>
    %2 = tpu.matmul %0, %1, %cst {dimension_numbers = #tpu.dot_dimension_numbers<[1], [0], [0], [1], [0, 0, 1, 1], [], []>} : vector<16x1152xbf16>, vector<1152x128xbf16>, vector<16x128xf32> -> vector<16x128xf32>
    %c0_3 = arith.constant 0 : index
    %c0_4 = arith.constant 0 : index
    %3 = vector.load %arg3[%c0_3, %c0_4] : memref<1x128xf32, #tpu.memory_space<vmem>>, vector<1x128xf32>
    %4 = vector.broadcast %3 : vector<1x128xf32> to vector<16x128xf32>
    %5 = arith.addf %2, %4 : vector<16x128xf32>
    %c0_5 = arith.constant 0 : index
    %c0_6 = arith.constant 0 : index
    %6 = vector.load %arg4[%c0_5, %c0_6] : memref<16x128xf32, #tpu.memory_space<vmem>>, vector<16x128xf32>
    tpu.vector_store %arg4[%c0_5, %c0_6], %5 {strides = array<i32>} : memref<16x128xf32, #tpu.memory_space<vmem>>, vector<16x128xf32>,
    %7 = arith.mulf %5, %5 : vector<16x128xf32>
    %cst_7 = arith.constant dense<0.000000e+00> : vector<16xf32>
    %8 = vector.multi_reduction <add>, %7, %cst_7 [1] : vector<16x128xf32> to vector<16xf32>
    %9 = vector.shape_cast %8 : vector<16xf32> to vector<16x1xf32>
    %cst_8 = arith.constant 3.125000e-02 : f32
    %10 = vector.broadcast %cst_8 : f32 to vector<16x1xf32>
    %11 = arith.mulf %9, %10 : vector<16x1xf32>
    %12 = vector.shape_cast %11 : vector<16x1xf32> to vector<16x1xf32>
    %13 = vector.broadcast %12 : vector<16x1xf32> to vector<16x128xf32>
    %c0_9 = arith.constant 0 : index
    %c0_10 = arith.constant 0 : index
    %14 = vector.load %arg5[%c0_9, %c0_10] : memref<16x128xf32, #tpu.memory_space<vmem>>, vector<16x128xf32>
    tpu.vector_store %arg5[%c0_9, %c0_10], %13 {strides = array<i32>} : memref<16x128xf32, #tpu.memory_space<vmem>>, vector<16x128xf32>,
    return
  }
  func.func @transform_0(%arg0: i32) -> (i32, i32) {
    %c0_i32 = arith.constant 0 : i32
    %c0_i32_0 = arith.constant 0 : i32
    return %arg0, %c0_i32 : i32, i32
  }
  func.func @transform_1(%arg0: i32) -> (i32, i32) {
    %c0_i32 = arith.constant 0 : i32
    %c0_i32_0 = arith.constant 0 : i32
    %c0_i32_1 = arith.constant 0 : i32
    return %c0_i32, %c0_i32_0 : i32, i32
  }
  func.func @transform_2(%arg0: i32) -> (i32, i32) {
    %c0_i32 = arith.constant 0 : i32
    %c0_i32_0 = arith.constant 0 : i32
    %c0_i32_1 = arith.constant 0 : i32
    return %c0_i32, %c0_i32_0 : i32, i32
  }
  func.func @transform_3(%arg0: i32) -> (i32, i32) {
    %c0_i32 = arith.constant 0 : i32
    %c0_i32_0 = arith.constant 0 : i32
    return %arg0, %c0_i32 : i32, i32
  }
  func.func @transform_4(%arg0: i32) -> (i32, i32) {
    %c0_i32 = arith.constant 0 : i32
    %c0_i32_0 = arith.constant 0 : i32
    return %arg0, %c0_i32 : i32, i32
  }
}

</mosaic_0001>

<llo_original>
// kernel: tpu_custom_call.1
$region0: #{tpu_custom_call.1}
  #allocation0 [shape = 'u32[]', space=smem, size = 0x4, offset = 0x4, fixed_abs, tag = 'smem constant byte address 0x4 - core index']
  #allocation1 [shape = 'u32[144,128]{1,0:T(1,128)}', space=vmem, size = 0x12000, scoped, tag = 'internal scratch']
  %s0 = inlined_call_operand.hbm [shape: bf16[16,1152], index: 0, kind: input, shape index: {}]
  %s1 = inlined_call_operand.hbm [shape: bf16[1152,128], index: 1, kind: input, shape index: {}]
  %s2 = inlined_call_operand.vmem [shape: f32[1,128], index: 2, kind: input, shape index: {}]
  %s3 = inlined_call_operand.hbm [shape: f32[16,128], index: 3, kind: output, shape index: {0}]
  %s4 = inlined_call_operand.hbm [shape: f32[16,128], index: 4, kind: output, shape index: {1}]
  %5 = xla_tuple %s3, %s4
  %s6 = sld [smem:[#allocation0]]
  $region38: #{tpu_custom_call.1} parent=0
    _
  %s8 = ssub.s32 1, %s6
  %s9 = scalar_select 0, %s8, %s6
  $region1: #{tpu_custom_call.1} parent=0
    #allocation2 [shape = 'u8[36864]{0}', space=vmem, size = 0x9000, scoped, tag = 'input window, operand 0, single buffered']
    #allocation3 [shape = 's32[1]{0}', space=sflag, size = 0x4, scoped, tag = 'scoped memory for tpu_custom_call.1']
    #allocation4 [shape = 's32[1]{0}', space=sflag, size = 0x4, scoped, tag = 'scoped memory for tpu_custom_call.1']
    #allocation5 [shape = 'u8[294912]{0}', space=vmem, size = 0x48000, scoped, tag = 'input window, operand 1, single buffered']
    #allocation6 [shape = 's32[1]{0}', space=sflag, size = 0x4, scoped, tag = 'scoped memory for tpu_custom_call.1']
    #allocation7 [shape = 'u8[8192]{0}', space=vmem, size = 0x2000, scoped, tag = 'output window, operand 0, single buffered']
    #allocation8 [shape = 'u8[8192]{0}', space=vmem, size = 0x2000, scoped, tag = 'output window, operand 1, single buffered']
    #allocation9 [shape = 's32[1]{0}', space=sflag, size = 0x4, scoped, tag = 'scoped memory for tpu_custom_call.1']
    %10 = vsyncpa [#allocation3], 0
    %11 = vsyncpa [#allocation6], 0
    %12 = vsyncpa [#allocation4], 0
    %13 = vsyncpa [#allocation9], 0
    // Predicated region
    $region2: #{tpu_custom_call.1} parent=1 // pred_check
      _
    $region3: #{tpu_custom_call.1} parent=1 // pred_check_branch
      %15 = sbr.rel (0) target = $region5
    $region4: #{tpu_custom_call.1} parent=1 // pred_region
      %s17 = ssub.s32 1152, 1152
      %18 = vsyncadd [#allocation3], %s17
      %s19 = sshll.u32 [#allocation2], 4
      %s20 = int_to_ptr.vmem [resolvable:$true] %s19
      %25 = dma.hbm_to_vmem [thread:$0]  %s0, 1152, %s20, [#allocation3], 576, 576, 36
    $region5: #{tpu_custom_call.1} parent=1 // pred_fallthru
      _
    // Predicated region
    $region6: #{tpu_custom_call.1} parent=1 // pred_check
      _
    $region7: #{tpu_custom_call.1} parent=1 // pred_check_branch
      %27 = sbr.rel (0) target = $region9
    $region8: #{tpu_custom_call.1} parent=1 // pred_region
      %s29 = ssub.s32 9216, 9216
      %30 = vsyncadd [#allocation6], %s29
      %s31 = sshll.u32 [#allocation5], 4
      %s32 = int_to_ptr.vmem [resolvable:$true] %s31
      %37 = dma.hbm_to_vmem [thread:$0]  %s1, 9216, %s32, [#allocation6], 64, 64, 4
    $region9: #{tpu_custom_call.1} parent=1 // pred_fallthru
      _
    // Predicated region
    $region10: #{tpu_custom_call.1} parent=1 // pred_check
      _
    $region11: #{tpu_custom_call.1} parent=1 // pred_check_branch
      %39 = sbr.rel (0) target = $region13
    $region12: #{tpu_custom_call.1} parent=1 // pred_region
      _
    $region13: #{tpu_custom_call.1} parent=1 // pred_fallthru
      _
    // Predicated region
    $region14: #{tpu_custom_call.1} parent=1 // pred_check
      _
    $region15: #{tpu_custom_call.1} parent=1 // pred_check_branch
      %41 = sbr.rel (0) target = $region17
    $region16: #{tpu_custom_call.1} parent=1 // pred_region
      %42 = dma.done [#allocation3], 1152
    $region17: #{tpu_custom_call.1} parent=1 // pred_fallthru
      _
    // Predicated region
    $region18: #{tpu_custom_call.1} parent=1 // pred_check
      _
    $region19: #{tpu_custom_call.1} parent=1 // pred_check_branch
      %44 = sbr.rel (0) target = $region21
    $region20: #{tpu_custom_call.1} parent=1 // pred_region
      %45 = dma.done [#allocation6], 9216
    $region21: #{tpu_custom_call.1} parent=1 // pred_fallthru
      _
    %v47 = vld [vmem:[#allocation2] sm:$0xff]
    %v48 = vld [vmem:[#allocation2 + $0x8] sm:$0xff]
    %v49 = vld [vmem:[#allocation2 + $0x10] sm:$0xff]
    %v50 = vld [vmem:[#allocation2 + $0x18] sm:$0xff]
    %v51 = vld [vmem:[#allocation2 + $0x20] sm:$0xf]
    %v52 = vld [vmem:[#allocation2 + $0x24] sm:$0xff]
    %v53 = vld [vmem:[#allocation2 + $0x2c] sm:$0xff]
    %v54 = vld [vmem:[#allocation2 + $0x34] sm:$0xff]
    %v55 = vld [vmem:[#allocation2 + $0x3c] sm:$0xff]
    %v56 = vld [vmem:[#allocation2 + $0x44] sm:$0xf]
    %v57 = vld [vmem:[#allocation5] sm:$0xf]
    %v58 = vld [vmem:[#allocation5 + $0x4] sm:$0xf]
    %v59 = vld [vmem:[#allocation5 + $0x8] sm:$0xf]
    %v60 = vld [vmem:[#allocation5 + $0xc] sm:$0xf]
    %v61 = vld [vmem:[#allocation5 + $0x10] sm:$0xf]
    %v62 = vld [vmem:[#allocation5 + $0x14] sm:$0xf]
    %v63 = vld [vmem:[#allocation5 + $0x18] sm:$0xf]
    %v64 = vld [vmem:[#allocation5 + $0x1c] sm:$0xf]
    %v65 = vld [vmem:[#allocation5 + $0x20] sm:$0xf]
    %v66 = vld [vmem:[#allocation5 + $0x24] sm:$0xf]
    %v67 = vld [vmem:[#allocation5 + $0x28] sm:$0xf]
    %v68 = vld [vmem:[#allocation5 + $0x2c] sm:$0xf]
    %v69 = vld [vmem:[#allocation5 + $0x30] sm:$0xf]
    %v70 = vld [vmem:[#allocation5 + $0x34] sm:$0xf]
    %v71 = vld [vmem:[#allocation5 + $0x38] sm:$0xf]
    %v72 = vld [vmem:[#allocation5 + $0x3c] sm:$0xf]
    %v73 = vld [vmem:[#allocation5 + $0x40] sm:$0xf]
    %v74 = vld [vmem:[#allocation5 + $0x44] sm:$0xf]
    %v75 = vld [vmem:[#allocation5 + $0x48] sm:$0xf]
    %v76 = vld [vmem:[#allocation5 + $0x4c] sm:$0xf]
    %v77 = vld [vmem:[#allocation5 + $0x50] sm:$0xf]
    %v78 = vld [vmem:[#allocation5 + $0x54] sm:$0xf]
    %v79 = vld [vmem:[#allocation5 + $0x58] sm:$0xf]
    %v80 = vld [vmem:[#allocation5 + $0x5c] sm:$0xf]
    %v81 = vld [vmem:[#allocation5 + $0x60] sm:$0xf]
    %v82 = vld [vmem:[#allocation5 + $0x64] sm:$0xf]
    %v83 = vld [vmem:[#allocation5 + $0x68] sm:$0xf]
    %v84 = vld [vmem:[#allocation5 + $0x6c] sm:$0xf]
    %v85 = vld [vmem:[#allocation5 + $0x70] sm:$0xf]
    %v86 = vld [vmem:[#allocation5 + $0x74] sm:$0xf]
    %v87 = vld [vmem:[#allocation5 + $0x78] sm:$0xf]
    %v88 = vld [vmem:[#allocation5 + $0x7c] sm:$0xf]
    %v89 = vld [vmem:[#allocation5 + $0x80] sm:$0xf]
    %v90 = vld [vmem:[#allocation5 + $0x84] sm:$0xf]
    %v91 = vld [vmem:[#allocation5 + $0x88] sm:$0xf]
    %v92 = vld [vmem:[#allocation5 + $0x8c] sm:$0xf]
    %v93 = vld [vmem:[#allocation5 + $0x90] sm:$0xf]
    %v94 = vld [vmem:[#allocation5 + $0x94] sm:$0xf]
    %v95 = vld [vmem:[#allocation5 + $0x98] sm:$0xf]
    %v96 = vld [vmem:[#allocation5 + $0x9c] sm:$0xf]
    %v97 = vld [vmem:[#allocation5 + $0xa0] sm:$0xf]
    %v98 = vld [vmem:[#allocation5 + $0xa4] sm:$0xf]
    %v99 = vld [vmem:[#allocation5 + $0xa8] sm:$0xf]
    %v100 = vld [vmem:[#allocation5 + $0xac] sm:$0xf]
    %v101 = vld [vmem:[#allocation5 + $0xb0] sm:$0xf]
    %v102 = vld [vmem:[#allocation5 + $0xb4] sm:$0xf]
    %v103 = vld [vmem:[#allocation5 + $0xb8] sm:$0xf]
    %v104 = vld [vmem:[#allocation5 + $0xbc] sm:$0xf]
    %v105 = vld [vmem:[#allocation5 + $0xc0] sm:$0xf]
    %v106 = vld [vmem:[#allocation5 + $0xc4] sm:$0xf]
    %v107 = vld [vmem:[#allocation5 + $0xc8] sm:$0xf]
    %v108 = vld [vmem:[#allocation5 + $0xcc] sm:$0xf]
    %v109 = vld [vmem:[#allocation5 + $0xd0] sm:$0xf]
    %v110 = vld [vmem:[#allocation5 + $0xd4] sm:$0xf]
    %v111 = vld [vmem:[#allocation5 + $0xd8] sm:$0xf]
    %v112 = vld [vmem:[#allocation5 + $0xdc] sm:$0xf]
    %v113 = vld [vmem:[#allocation5 + $0xe0] sm:$0xf]
    %v114 = vld [vmem:[#allocation5 + $0xe4] sm:$0xf]
    %v115 = vld [vmem:[#allocation5 + $0xe8] sm:$0xf]
    %v116 = vld [vmem:[#allocation5 + $0xec] sm:$0xf]
    %v117 = vld [vmem:[#allocation5 + $0xf0] sm:$0xf]
    %v118 = vld [vmem:[#allocation5 + $0xf4] sm:$0xf]
    %v119 = vld [vmem:[#allocation5 + $0xf8] sm:$0xf]
    %v120 = vld [vmem:[#allocation5 + $0xfc] sm:$0xf]
    %v121 = vld [vmem:[#allocation5 + $0x100] sm:$0xf]
    %v122 = vld [vmem:[#allocation5 + $0x104] sm:$0xf]
    %v123 = vld [vmem:[#allocation5 + $0x108] sm:$0xf]
    %v124 = vld [vmem:[#allocation5 + $0x10c] sm:$0xf]
    %v125 = vld [vmem:[#allocation5 + $0x110] sm:$0xf]
    %v126 = vld [vmem:[#allocation5 + $0x114] sm:$0xf]
    %v127 = vld [vmem:[#allocation5 + $0x118] sm:$0xf]
    %v128 = vld [vmem:[#allocation5 + $0x11c] sm:$0xf]
    %v129 = vld [vmem:[#allocation5 + $0x120] sm:$0xf]
    %v130 = vld [vmem:[#allocation5 + $0x124] sm:$0xf]
    %v131 = vld [vmem:[#allocation5 + $0x128] sm:$0xf]
    %v132 = vld [vmem:[#allocation5 + $0x12c] sm:$0xf]
    %v133 = vld [vmem:[#allocation5 + $0x130] sm:$0xf]
    %v134 = vld [vmem:[#allocation5 + $0x134] sm:$0xf]
    %v135 = vld [vmem:[#allocation5 + $0x138] sm:$0xf]
    %v136 = vld [vmem:[#allocation5 + $0x13c] sm:$0xf]
    %v137 = vld [vmem:[#allocation5 + $0x140] sm:$0xf]
    %v138 = vld [vmem:[#allocation5 + $0x144] sm:$0xf]
    %v139 = vld [vmem:[#allocation5 + $0x148] sm:$0xf]
    %v140 = vld [vmem:[#allocation5 + $0x14c] sm:$0xf]
    %v141 = vld [vmem:[#allocation5 + $0x150] sm:$0xf]
    %v142 = vld [vmem:[#allocation5 + $0x154] sm:$0xf]
    %v143 = vld [vmem:[#allocation5 + $0x158] sm:$0xf]
    %v144 = vld [vmem:[#allocation5 + $0x15c] sm:$0xf]
    %v145 = vld [vmem:[#allocation5 + $0x160] sm:$0xf]
    %v146 = vld [vmem:[#allocation5 + $0x164] sm:$0xf]
    %v147 = vld [vmem:[#allocation5 + $0x168] sm:$0xf]
    %v148 = vld [vmem:[#allocation5 + $0x16c] sm:$0xf]
    %v149 = vld [vmem:[#allocation5 + $0x170] sm:$0xf]
    %v150 = vld [vmem:[#allocation5 + $0x174] sm:$0xf]
    %v151 = vld [vmem:[#allocation5 + $0x178] sm:$0xf]
    %v152 = vld [vmem:[#allocation5 + $0x17c] sm:$0xf]
    %v153 = vld [vmem:[#allocation5 + $0x180] sm:$0xf]
    %v154 = vld [vmem:[#allocation5 + $0x184] sm:$0xf]
    %v155 = vld [vmem:[#allocation5 + $0x188] sm:$0xf]
    %v156 = vld [vmem:[#allocation5 + $0x18c] sm:$0xf]
    %v157 = vld [vmem:[#allocation5 + $0x190] sm:$0xf]
    %v158 = vld [vmem:[#allocation5 + $0x194] sm:$0xf]
    %v159 = vld [vmem:[#allocation5 + $0x198] sm:$0xf]
    %v160 = vld [vmem:[#allocation5 + $0x19c] sm:$0xf]
    %v161 = vld [vmem:[#allocation5 + $0x1a0] sm:$0xf]
    %v162 = vld [vmem:[#allocation5 + $0x1a4] sm:$0xf]
    %v163 = vld [vmem:[#allocation5 + $0x1a8] sm:$0xf]
    %v164 = vld [vmem:[#allocation5 + $0x1ac] sm:$0xf]
    %v165 = vld [vmem:[#allocation5 + $0x1b0] sm:$0xf]
    %v166 = vld [vmem:[#allocation5 + $0x1b4] sm:$0xf]
    %v167 = vld [vmem:[#allocation5 + $0x1b8] sm:$0xf]
    %v168 = vld [vmem:[#allocation5 + $0x1bc] sm:$0xf]
    %v169 = vld [vmem:[#allocation5 + $0x1c0] sm:$0xf]
    %v170 = vld [vmem:[#allocation5 + $0x1c4] sm:$0xf]
    %v171 = vld [vmem:[#allocation5 + $0x1c8] sm:$0xf]
    %v172 = vld [vmem:[#allocation5 + $0x1cc] sm:$0xf]
    %v173 = vld [vmem:[#allocation5 + $0x1d0] sm:$0xf]
    %v174 = vld [vmem:[#allocation5 + $0x1d4] sm:$0xf]
    %v175 = vld [vmem:[#allocation5 + $0x1d8] sm:$0xf]
    %v176 = vld [vmem:[#allocation5 + $0x1dc] sm:$0xf]
    %v177 = vld [vmem:[#allocation5 + $0x1e0] sm:$0xf]
    %v178 = vld [vmem:[#allocation5 + $0x1e4] sm:$0xf]
    %v179 = vld [vmem:[#allocation5 + $0x1e8] sm:$0xf]
    %v180 = vld [vmem:[#allocation5 + $0x1ec] sm:$0xf]
    %v181 = vld [vmem:[#allocation5 + $0x1f0] sm:$0xf]
    %v182 = vld [vmem:[#allocation5 + $0x1f4] sm:$0xf]
    %v183 = vld [vmem:[#allocation5 + $0x1f8] sm:$0xf]
    %v184 = vld [vmem:[#allocation5 + $0x1fc] sm:$0xf]
    %v185 = vld [vmem:[#allocation5 + $0x200] sm:$0xf]
    %v186 = vld [vmem:[#allocation5 + $0x204] sm:$0xf]
    %v187 = vld [vmem:[#allocation5 + $0x208] sm:$0xf]
    %v188 = vld [vmem:[#allocation5 + $0x20c] sm:$0xf]
    %v189 = vld [vmem:[#allocation5 + $0x210] sm:$0xf]
    %v190 = vld [vmem:[#allocation5 + $0x214] sm:$0xf]
    %v191 = vld [vmem:[#allocation5 + $0x218] sm:$0xf]
    %v192 = vld [vmem:[#allocation5 + $0x21c] sm:$0xf]
    %v193 = vld [vmem:[#allocation5 + $0x220] sm:$0xf]
    %v194 = vld [vmem:[#allocation5 + $0x224] sm:$0xf]
    %v195 = vld [vmem:[#allocation5 + $0x228] sm:$0xf]
    %v196 = vld [vmem:[#allocation5 + $0x22c] sm:$0xf]
    %v197 = vld [vmem:[#allocation5 + $0x230] sm:$0xf]
    %v198 = vld [vmem:[#allocation5 + $0x234] sm:$0xf]
    %v199 = vld [vmem:[#allocation5 + $0x238] sm:$0xf]
    %v200 = vld [vmem:[#allocation5 + $0x23c] sm:$0xf]
    %v201 = vld [vmem:[%s2] sm:$0x1]
    %v203 = vlaneseq
    %v204 = vshrl.u32 %v203, 7
    %v205 = vsub.s32 0, %v204
    %v206 = vrot.slane %v201, %v205
    %v218 = vunpack.c.l.b16 %v47
    %v219 = vunpack.c.h.b16 %v47
    %v220 = vunpack.c.l.b16 %v48
    %v221 = vunpack.c.h.b16 %v48
    %v222 = vunpack.c.l.b16 %v49
    %v223 = vunpack.c.h.b16 %v49
    %v224 = vunpack.c.l.b16 %v50
    %v225 = vunpack.c.h.b16 %v50
    %v226 = vunpack.c.l.b16 %v51
    %v227 = vunpack.c.l.b16 %v52
    %v228 = vunpack.c.h.b16 %v52
    %v229 = vunpack.c.l.b16 %v53
    %v230 = vunpack.c.h.b16 %v53
    %v231 = vunpack.c.l.b16 %v54
    %v232 = vunpack.c.h.b16 %v54
    %v233 = vunpack.c.l.b16 %v55
    %v234 = vunpack.c.h.b16 %v55
    %v235 = vunpack.c.l.b16 %v56
    %v236 = vpack.c.b16 %v227, %v218
    %v237 = vpack.c.b16 %v228, %v219
    %v238 = vpack.c.b16 %v229, %v220
    %v239 = vpack.c.b16 %v230, %v221
    %v240 = vpack.c.b16 %v231, %v222
    %v241 = vpack.c.b16 %v232, %v223
    %v242 = vpack.c.b16 %v233, %v224
    %v243 = vpack.c.b16 %v234, %v225
    %v244 = vpack.c.b16 %v235, %v226
    %v398 = vunpack.c.l.b16 %v57
    %v399 = vunpack.c.l.b16 %v58
    %v400 = vunpack.c.l.b16 %v59
    %v401 = vunpack.c.l.b16 %v60
    %v402 = vunpack.c.l.b16 %v61
    %v403 = vunpack.c.l.b16 %v62
    %v404 = vunpack.c.l.b16 %v63
    %v405 = vunpack.c.l.b16 %v64
    %v406 = vunpack.c.l.b16 %v65
    %v407 = vunpack.c.l.b16 %v66
    %v408 = vunpack.c.l.b16 %v67
    %v409 = vunpack.c.l.b16 %v68
    %v410 = vunpack.c.l.b16 %v69
    %v411 = vunpack.c.l.b16 %v70
    %v412 = vunpack.c.l.b16 %v71
    %v413 = vunpack.c.l.b16 %v72
    %v414 = vunpack.c.l.b16 %v73
    %v415 = vunpack.c.l.b16 %v74
    %v416 = vunpack.c.l.b16 %v75
    %v417 = vunpack.c.l.b16 %v76
    %v418 = vunpack.c.l.b16 %v77
    %v419 = vunpack.c.l.b16 %v78
    %v420 = vunpack.c.l.b16 %v79
    %v421 = vunpack.c.l.b16 %v80
    %v422 = vunpack.c.l.b16 %v81
    %v423 = vunpack.c.l.b16 %v82
    %v424 = vunpack.c.l.b16 %v83
    %v425 = vunpack.c.l.b16 %v84
    %v426 = vunpack.c.l.b16 %v85
    %v427 = vunpack.c.l.b16 %v86
    %v428 = vunpack.c.l.b16 %v87
    %v429 = vunpack.c.l.b16 %v88
    %v430 = vunpack.c.l.b16 %v89
    %v431 = vunpack.c.l.b16 %v90
    %v432 = vunpack.c.l.b16 %v91
    %v433 = vunpack.c.l.b16 %v92
    %v434 = vunpack.c.l.b16 %v93
    %v435 = vunpack.c.l.b16 %v94
    %v436 = vunpack.c.l.b16 %v95
    %v437 = vunpack.c.l.b16 %v96
    %v438 = vunpack.c.l.b16 %v97
    %v439 = vunpack.c.l.b16 %v98
    %v440 = vunpack.c.l.b16 %v99
    %v441 = vunpack.c.l.b16 %v100
    %v442 = vunpack.c.l.b16 %v101
    %v443 = vunpack.c.l.b16 %v102
    %v444 = vunpack.c.l.b16 %v103
    %v445 = vunpack.c.l.b16 %v104
    %v446 = vunpack.c.l.b16 %v105
    %v447 = vunpack.c.l.b16 %v106
    %v448 = vunpack.c.l.b16 %v107
    %v449 = vunpack.c.l.b16 %v108
    %v450 = vunpack.c.l.b16 %v109
    %v451 = vunpack.c.l.b16 %v110
    %v452 = vunpack.c.l.b16 %v111
    %v453 = vunpack.c.l.b16 %v112
    %v454 = vunpack.c.l.b16 %v113
    %v455 = vunpack.c.l.b16 %v114
    %v456 = vunpack.c.l.b16 %v115
    %v457 = vunpack.c.l.b16 %v116
    %v458 = vunpack.c.l.b16 %v117
    %v459 = vunpack.c.l.b16 %v118
    %v460 = vunpack.c.l.b16 %v119
    %v461 = vunpack.c.l.b16 %v120
    %v462 = vunpack.c.l.b16 %v121
    %v463 = vunpack.c.l.b16 %v122
    %v464 = vunpack.c.l.b16 %v123
    %v465 = vunpack.c.l.b16 %v124
    %v466 = vunpack.c.l.b16 %v125
    %v467 = vunpack.c.l.b16 %v126
    %v468 = vunpack.c.l.b16 %v127
    %v469 = vunpack.c.l.b16 %v128
    %v470 = vunpack.c.l.b16 %v129
    %v471 = vunpack.c.l.b16 %v130
    %v472 = vunpack.c.l.b16 %v131
    %v473 = vunpack.c.l.b16 %v132
    %v474 = vunpack.c.l.b16 %v133
    %v475 = vunpack.c.l.b16 %v134
    %v476 = vunpack.c.l.b16 %v135
    %v477 = vunpack.c.l.b16 %v136
    %v478 = vunpack.c.l.b16 %v137
    %v479 = vunpack.c.l.b16 %v138
    %v480 = vunpack.c.l.b16 %v139
    %v481 = vunpack.c.l.b16 %v140
    %v482 = vunpack.c.l.b16 %v141
    %v483 = vunpack.c.l.b16 %v142
    %v484 = vunpack.c.l.b16 %v143
    %v485 = vunpack.c.l.b16 %v144
    %v486 = vunpack.c.l.b16 %v145
    %v487 = vunpack.c.l.b16 %v146
    %v488 = vunpack.c.l.b16 %v147
    %v489 = vunpack.c.l.b16 %v148
    %v490 = vunpack.c.l.b16 %v149
    %v491 = vunpack.c.l.b16 %v150
    %v492 = vunpack.c.l.b16 %v151
    %v493 = vunpack.c.l.b16 %v152
    %v494 = vunpack.c.l.b16 %v153
    %v495 = vunpack.c.l.b16 %v154
    %v496 = vunpack.c.l.b16 %v155
    %v497 = vunpack.c.l.b16 %v156
    %v498 = vunpack.c.l.b16 %v157
    %v499 = vunpack.c.l.b16 %v158
    %v500 = vunpack.c.l.b16 %v159
    %v501 = vunpack.c.l.b16 %v160
    %v502 = vunpack.c.l.b16 %v161
    %v503 = vunpack.c.l.b16 %v162
    %v504 = vunpack.c.l.b16 %v163
    %v505 = vunpack.c.l.b16 %v164
    %v506 = vunpack.c.l.b16 %v165
    %v507 = vunpack.c.l.b16 %v166
    %v508 = vunpack.c.l.b16 %v167
    %v509 = vunpack.c.l.b16 %v168
    %v510 = vunpack.c.l.b16 %v169
    %v511 = vunpack.c.l.b16 %v170
    %v512 = vunpack.c.l.b16 %v171
    %v513 = vunpack.c.l.b16 %v172
    %v514 = vunpack.c.l.b16 %v173
    %v515 = vunpack.c.l.b16 %v174
    %v516 = vunpack.c.l.b16 %v175
    %v517 = vunpack.c.l.b16 %v176
    %v518 = vunpack.c.l.b16 %v177
    %v519 = vunpack.c.l.b16 %v178
    %v520 = vunpack.c.l.b16 %v179
    %v521 = vunpack.c.l.b16 %v180
    %v522 = vunpack.c.l.b16 %v181
    %v523 = vunpack.c.l.b16 %v182
    %v524 = vunpack.c.l.b16 %v183
    %v525 = vunpack.c.l.b16 %v184
    %v526 = vunpack.c.l.b16 %v185
    %v527 = vunpack.c.l.b16 %v186
    %v528 = vunpack.c.l.b16 %v187
    %v529 = vunpack.c.l.b16 %v188
    %v530 = vunpack.c.l.b16 %v189
    %v531 = vunpack.c.l.b16 %v190
    %v532 = vunpack.c.l.b16 %v191
    %v533 = vunpack.c.l.b16 %v192
    %v534 = vunpack.c.l.b16 %v193
    %v535 = vunpack.c.l.b16 %v194
    %v536 = vunpack.c.l.b16 %v195
    %v537 = vunpack.c.l.b16 %v196
    %v538 = vunpack.c.l.b16 %v197
    %v539 = vunpack.c.l.b16 %v198
    %v540 = vunpack.c.l.b16 %v199
    %v541 = vunpack.c.l.b16 %v200
    %v542 = vpack.c.b16 %v399, %v398
    %v543 = vpack.c.b16 %v401, %v400
    %v544 = vpack.c.b16 %v403, %v402
    %v545 = vpack.c.b16 %v405, %v404
    %v546 = vpack.c.b16 %v407, %v406
    %v547 = vpack.c.b16 %v409, %v408
    %v548 = vpack.c.b16 %v411, %v410
    %v549 = vpack.c.b16 %v413, %v412
    %v550 = vpack.c.b16 %v415, %v414
    %v551 = vpack.c.b16 %v417, %v416
    %v552 = vpack.c.b16 %v419, %v418
    %v553 = vpack.c.b16 %v421, %v420
    %v554 = vpack.c.b16 %v423, %v422
    %v555 = vpack.c.b16 %v425, %v424
    %v556 = vpack.c.b16 %v427, %v426
    %v557 = vpack.c.b16 %v429, %v428
    %v558 = vpack.c.b16 %v431, %v430
    %v559 = vpack.c.b16 %v433, %v432
    %v560 = vpack.c.b16 %v435, %v434
    %v561 = vpack.c.b16 %v437, %v436
    %v562 = vpack.c.b16 %v439, %v438
    %v563 = vpack.c.b16 %v441, %v440
    %v564 = vpack.c.b16 %v443, %v442
    %v565 = vpack.c.b16 %v445, %v444
    %v566 = vpack.c.b16 %v447, %v446
    %v567 = vpack.c.b16 %v449, %v448
    %v568 = vpack.c.b16 %v451, %v450
    %v569 = vpack.c.b16 %v453, %v452
    %v570 = vpack.c.b16 %v455, %v454
    %v571 = vpack.c.b16 %v457, %v456
    %v572 = vpack.c.b16 %v459, %v458
    %v573 = vpack.c.b16 %v461, %v460
    %v574 = vpack.c.b16 %v463, %v462
    %v575 = vpack.c.b16 %v465, %v464
    %v576 = vpack.c.b16 %v467, %v466
    %v577 = vpack.c.b16 %v469, %v468
    %v578 = vpack.c.b16 %v471, %v470
    %v579 = vpack.c.b16 %v473, %v472
    %v580 = vpack.c.b16 %v475, %v474
    %v581 = vpack.c.b16 %v477, %v476
    %v582 = vpack.c.b16 %v479, %v478
    %v583 = vpack.c.b16 %v481, %v480
    %v584 = vpack.c.b16 %v483, %v482
    %v585 = vpack.c.b16 %v485, %v484
    %v586 = vpack.c.b16 %v487, %v486
    %v587 = vpack.c.b16 %v489, %v488
    %v588 = vpack.c.b16 %v491, %v490
    %v589 = vpack.c.b16 %v493, %v492
    %v590 = vpack.c.b16 %v495, %v494
    %v591 = vpack.c.b16 %v497, %v496
    %v592 = vpack.c.b16 %v499, %v498
    %v593 = vpack.c.b16 %v501, %v500
    %v594 = vpack.c.b16 %v503, %v502
    %v595 = vpack.c.b16 %v505, %v504
    %v596 = vpack.c.b16 %v507, %v506
    %v597 = vpack.c.b16 %v509, %v508
    %v598 = vpack.c.b16 %v511, %v510
    %v599 = vpack.c.b16 %v513, %v512
    %v600 = vpack.c.b16 %v515, %v514
    %v601 = vpack.c.b16 %v517, %v516
    %v602 = vpack.c.b16 %v519, %v518
    %v603 = vpack.c.b16 %v521, %v520
    %v604 = vpack.c.b16 %v523, %v522
    %v605 = vpack.c.b16 %v525, %v524
    %v606 = vpack.c.b16 %v527, %v526
    %v607 = vpack.c.b16 %v529, %v528
    %v608 = vpack.c.b16 %v531, %v530
    %v609 = vpack.c.b16 %v533, %v532
    %v610 = vpack.c.b16 %v535, %v534
    %v611 = vpack.c.b16 %v537, %v536
    %v612 = vpack.c.b16 %v539, %v538
    %v613 = vpack.c.b16 %v541, %v540
    %686 = vmatprep.subr.bf16.mxu0 0
    %687 = vmatpush1.bf16.msra.mxu0 %v542
    %688 = vmatprep.subr.bf16.mxu0 0
    %689 = vmatpush1.bf16.msra.mxu0 %v543
    %690 = vmatprep.subr.bf16.mxu0 0
    %691 = vmatpush1.bf16.msra.mxu0 %v544
    %692 = vmatprep.subr.bf16.mxu0 0
    %693 = vmatpush1.bf16.msra.mxu0 %v545
    %694 = vmatprep.subr.bf16.mxu0 0
    %695 = vmatpush1.bf16.msra.mxu0 %v546
    %696 = vmatprep.subr.bf16.mxu0 0
    %697 = vmatpush1.bf16.msra.mxu0 %v547
    %698 = vmatprep.subr.bf16.mxu0 0
    %699 = vmatpush1.bf16.msra.mxu0 %v548
    %700 = vmatprep.subr.bf16.mxu0 0
    %701 = vmatpush1.bf16.msra.mxu0 %v549
    %702 = vmatprep.subr.bf16.mxu0 0
    %703 = vmatpush1.bf16.msra.mxu0 %v550
    %704 = vmatprep.subr.bf16.mxu0 0
    %705 = vmatpush1.bf16.msra.mxu0 %v551
    %706 = vmatprep.subr.bf16.mxu0 0
    %707 = vmatpush1.bf16.msra.mxu0 %v552
    %708 = vmatprep.subr.bf16.mxu0 0
    %709 = vmatpush1.bf16.msra.mxu0 %v553
    %710 = vmatprep.subr.bf16.mxu0 0
    %711 = vmatpush1.bf16.msra.mxu0 %v554
    %712 = vmatprep.subr.bf16.mxu0 0
    %713 = vmatpush1.bf16.msra.mxu0 %v555
    %714 = vmatprep.subr.bf16.mxu0 0
    %715 = vmatpush1.bf16.msra.mxu0 %v556
    %716 = vmatprep.subr.bf16.mxu0 0
    %717 = vmatpush1.bf16.msra.mxu0 %v557
    %718 = vmatprep.mubr.bf16.mxu0 %v237
    %719 = vmatmul.mubr.bf16.gmra.mrb[0].mxu0 %v236
    %v720 = vpop.f32.mrb[0].mxu0
    %v721 = vadd.f32 %v206, %v720
    %v722 = vpop.f32.mrb[0].mxu0
    %v723 = vpop.f32.mrb[0].mxu0
    %v724 = vadd.f32 %v206, %v723
    %v725 = vpop.f32.mrb[0].mxu0
    %726 = vdwg.mxu0
    %727 = vmatprep.subr.bf16.mxu0 0
    %728 = vmatpush1.bf16.msra.mxu0 %v558
    %729 = vmatprep.subr.bf16.mxu0 0
    %730 = vmatpush1.bf16.msra.mxu0 %v559
    %731 = vmatprep.subr.bf16.mxu0 0
    %732 = vmatpush1.bf16.msra.mxu0 %v560
    %733 = vmatprep.subr.bf16.mxu0 0
    %734 = vmatpush1.bf16.msra.mxu0 %v561
    %735 = vmatprep.subr.bf16.mxu0 0
    %736 = vmatpush1.bf16.msra.mxu0 %v562
    %737 = vmatprep.subr.bf16.mxu0 0
    %738 = vmatpush1.bf16.msra.mxu0 %v563
    %739 = vmatprep.subr.bf16.mxu0 0
    %740 = vmatpush1.bf16.msra.mxu0 %v564
    %741 = vmatprep.subr.bf16.mxu0 0
    %742 = vmatpush1.bf16.msra.mxu0 %v565
    %743 = vmatprep.subr.bf16.mxu0 0
    %744 = vmatpush1.bf16.msra.mxu0 %v566
    %745 = vmatprep.subr.bf16.mxu0 0
    %746 = vmatpush1.bf16.msra.mxu0 %v567
    %747 = vmatprep.subr.bf16.mxu0 0
    %748 = vmatpush1.bf16.msra.mxu0 %v568
    %749 = vmatprep.subr.bf16.mxu0 0
    %750 = vmatpush1.bf16.msra.mxu0 %v569
    %751 = vmatprep.subr.bf16.mxu0 0
    %752 = vmatpush1.bf16.msra.mxu0 %v570
    %753 = vmatprep.subr.bf16.mxu0 0
    %754 = vmatpush1.bf16.msra.mxu0 %v571
    %755 = vmatprep.subr.bf16.mxu0 0
    %756 = vmatpush1.bf16.msra.mxu0 %v572
    %757 = vmatprep.subr.bf16.mxu0 0
    %758 = vmatpush1.bf16.msra.mxu0 %v573
    %759 = vmatprep.mubr.bf16.mxu0 %v239
    %760 = vmatmul.mubr.bf16.gmra.mrb[0].mxu0 %v238
    %v761 = vpop.f32.mrb[0].mxu0
    %v762 = vadd.f32 %v721, %v761
    %v763 = vpop.f32.mrb[0].mxu0
    %v764 = vpop.f32.mrb[0].mxu0
    %v765 = vadd.f32 %v724, %v764
    %v766 = vpop.f32.mrb[0].mxu0
    %767 = vdwg.mxu0
    %768 = vmatprep.subr.bf16.mxu0 0
    %769 = vmatpush1.bf16.msra.mxu0 %v574
    %770 = vmatprep.subr.bf16.mxu0 0
    %771 = vmatpush1.bf16.msra.mxu0 %v575
    %772 = vmatprep.subr.bf16.mxu0 0
    %773 = vmatpush1.bf16.msra.mxu0 %v576
    %774 = vmatprep.subr.bf16.mxu0 0
    %775 = vmatpush1.bf16.msra.mxu0 %v577
    %776 = vmatprep.subr.bf16.mxu0 0
    %777 = vmatpush1.bf16.msra.mxu0 %v578
    %778 = vmatprep.subr.bf16.mxu0 0
    %779 = vmatpush1.bf16.msra.mxu0 %v579
    %780 = vmatprep.subr.bf16.mxu0 0
    %781 = vmatpush1.bf16.msra.mxu0 %v580
    %782 = vmatprep.subr.bf16.mxu0 0
    %783 = vmatpush1.bf16.msra.mxu0 %v581
    %784 = vmatprep.subr.bf16.mxu0 0
    %785 = vmatpush1.bf16.msra.mxu0 %v582
    %786 = vmatprep.subr.bf16.mxu0 0
    %787 = vmatpush1.bf16.msra.mxu0 %v583
    %788 = vmatprep.subr.bf16.mxu0 0
    %789 = vmatpush1.bf16.msra.mxu0 %v584
    %790 = vmatprep.subr.bf16.mxu0 0
    %791 = vmatpush1.bf16.msra.mxu0 %v585
    %792 = vmatprep.subr.bf16.mxu0 0
    %793 = vmatpush1.bf16.msra.mxu0 %v586
    %794 = vmatprep.subr.bf16.mxu0 0
    %795 = vmatpush1.bf16.msra.mxu0 %v587
    %796 = vmatprep.subr.bf16.mxu0 0
    %797 = vmatpush1.bf16.msra.mxu0 %v588
    %798 = vmatprep.subr.bf16.mxu0 0
    %799 = vmatpush1.bf16.msra.mxu0 %v589
    %800 = vmatprep.mubr.bf16.mxu0 %v241
    %801 = vmatmul.mubr.bf16.gmra.mrb[0].mxu0 %v240
    %v802 = vpop.f32.mrb[0].mxu0
    %v803 = vadd.f32 %v762, %v802
    %v804 = vpop.f32.mrb[0].mxu0
    %v805 = vpop.f32.mrb[0].mxu0
    %v806 = vadd.f32 %v765, %v805
    %v807 = vpop.f32.mrb[0].mxu0
    %808 = vdwg.mxu0
    %809 = vmatprep.subr.bf16.mxu0 0
    %810 = vmatpush1.bf16.msra.mxu0 %v590
    %811 = vmatprep.subr.bf16.mxu0 0
    %812 = vmatpush1.bf16.msra.mxu0 %v591
    %813 = vmatprep.subr.bf16.mxu0 0
    %814 = vmatpush1.bf16.msra.mxu0 %v592
    %815 = vmatprep.subr.bf16.mxu0 0
    %816 = vmatpush1.bf16.msra.mxu0 %v593
    %817 = vmatprep.subr.bf16.mxu0 0
    %818 = vmatpush1.bf16.msra.mxu0 %v594
    %819 = vmatprep.subr.bf16.mxu0 0
    %820 = vmatpush1.bf16.msra.mxu0 %v595
    %821 = vmatprep.subr.bf16.mxu0 0
    %822 = vmatpush1.bf16.msra.mxu0 %v596
    %823 = vmatprep.subr.bf16.mxu0 0
    %824 = vmatpush1.bf16.msra.mxu0 %v597
    %825 = vmatprep.subr.bf16.mxu0 0
    %826 = vmatpush1.bf16.msra.mxu0 %v598
    %827 = vmatprep.subr.bf16.mxu0 0
    %828 = vmatpush1.bf16.msra.mxu0 %v599
    %829 = vmatprep.subr.bf16.mxu0 0
    %830 = vmatpush1.bf16.msra.mxu0 %v600
    %831 = vmatprep.subr.bf16.mxu0 0
    %832 = vmatpush1.bf16.msra.mxu0 %v601
    %833 = vmatprep.subr.bf16.mxu0 0
    %834 = vmatpush1.bf16.msra.mxu0 %v602
    %835 = vmatprep.subr.bf16.mxu0 0
    %836 = vmatpush1.bf16.msra.mxu0 %v603
    %837 = vmatprep.subr.bf16.mxu0 0
    %838 = vmatpush1.bf16.msra.mxu0 %v604
    %839 = vmatprep.subr.bf16.mxu0 0
    %840 = vmatpush1.bf16.msra.mxu0 %v605
    %841 = vmatprep.mubr.bf16.mxu0 %v243
    %842 = vmatmul.mubr.bf16.gmra.mrb[0].mxu0 %v242
    %v843 = vpop.f32.mrb[0].mxu0
    %v844 = vadd.f32 %v803, %v843
    %v845 = vpop.f32.mrb[0].mxu0
    %v846 = vpop.f32.mrb[0].mxu0
    %v847 = vadd.f32 %v806, %v846
    %v848 = vpop.f32.mrb[0].mxu0
    %849 = vdwg.mxu0
    %850 = vmatprep.subr.bf16.mxu0 0
    %851 = vmatpush1.bf16.msra.mxu0 %v606
    %852 = vmatprep.subr.bf16.mxu0 0
    %853 = vmatpush1.bf16.msra.mxu0 %v607
    %854 = vmatprep.subr.bf16.mxu0 0
    %855 = vmatpush1.bf16.msra.mxu0 %v608
    %856 = vmatprep.subr.bf16.mxu0 0
    %857 = vmatpush1.bf16.msra.mxu0 %v609
    %858 = vmatprep.subr.bf16.mxu0 0
    %859 = vmatpush1.bf16.msra.mxu0 %v610
    %860 = vmatprep.subr.bf16.mxu0 0
    %861 = vmatpush1.bf16.msra.mxu0 %v611
    %862 = vmatprep.subr.bf16.mxu0 0
    %863 = vmatpush1.bf16.msra.mxu0 %v612
    %864 = vmatprep.subr.bf16.mxu0 0
    %865 = vmatpush1.bf16.msra.mxu0 %v613
    %866 = vmatprep.subr.bf16.mxu0 0
    %867 = vmatpush1.bf16.msra.mxu0 0
    %868 = vmatprep.subr.bf16.mxu0 0
    %869 = vmatpush1.bf16.msra.mxu0 0
    %870 = vmatprep.subr.bf16.mxu0 0
    %871 = vmatpush1.bf16.msra.mxu0 0
    %872 = vmatprep.subr.bf16.mxu0 0
    %873 = vmatpush1.bf16.msra.mxu0 0
    %874 = vmatprep.subr.bf16.mxu0 0
    %875 = vmatpush1.bf16.msra.mxu0 0
    %876 = vmatprep.subr.bf16.mxu0 0
    %877 = vmatpush1.bf16.msra.mxu0 0
    %878 = vmatprep.subr.bf16.mxu0 0
    %879 = vmatpush1.bf16.msra.mxu0 0
    %880 = vmatprep.subr.bf16.mxu0 0
    %881 = vmatpush1.bf16.msra.mxu0 0
    %882 = vmatprep.mubr.bf16.mxu0 0
    %883 = vmatmul.mubr.bf16.gmra.mrb[0].mxu0 %v244
    %v884 = vpop.f32.mrb[0].mxu0
    %v885 = vadd.f32 %v844, %v884
    %v886 = vpop.f32.mrb[0].mxu0
    %v887 = vpop.f32.mrb[0].mxu0
    %v888 = vadd.f32 %v847, %v887
    %v889 = vpop.f32.mrb[0].mxu0
    %890 = vdwg.mxu0
    %891 = vst [vmem:[#allocation7] sm:$0xff] %v885
    %892 = vst [vmem:[#allocation7 + $0x8] sm:$0xff] %v888
    %v893 = vmul.f32 %v885, %v885
    %v894 = vmul.f32 %v888, %v888
    %895 = vadd.xlane.f32.xlu0 %v893
    %v896 = vpop.xlane.xlu0 %895
    %897 = vadd.xlane.f32.xlu0 %v894
    %v898 = vpop.xlane.xlu0 %897
    %v899 = vmul.f32 %v896, 0.03125
    %v900 = vmul.f32 %v898, 0.03125
    %901 = vst [vmem:[#allocation8] sm:$0xff] %v899
    %902 = vst [vmem:[#allocation8 + $0x8] sm:$0xff] %v900
    // Predicated region
    $region22: #{tpu_custom_call.1} parent=1 // pred_check
      _
    $region23: #{tpu_custom_call.1} parent=1 // pred_check_branch
      %904 = sbr.rel (0) target = $region25
    $region24: #{tpu_custom_call.1} parent=1 // pred_region
      %s906 = ssub.s32 256, 256
      %907 = vsyncadd [#allocation4], %s906
      %s908 = sshll.u32 [#allocation7], 4
      %s909 = int_to_ptr.vmem [resolvable:$true] %s908
      %914 = dma.vmem_to_hbm [thread:$0]  %s909, 256, %s3, [#allocation4], 128, 128, 8
    $region25: #{tpu_custom_call.1} parent=1 // pred_fallthru
      _
    // Predicated region
    $region26: #{tpu_custom_call.1} parent=1 // pred_check
      _
    $region27: #{tpu_custom_call.1} parent=1 // pred_check_branch
      %916 = sbr.rel (0) target = $region29
    $region28: #{tpu_custom_call.1} parent=1 // pred_region
      %s918 = ssub.s32 256, 256
      %919 = vsyncadd [#allocation9], %s918
      %s920 = sshll.u32 [#allocation8], 4
      %s921 = int_to_ptr.vmem [resolvable:$true] %s920
      %926 = dma.vmem_to_hbm [thread:$0]  %s921, 256, %s4, [#allocation9], 128, 128, 8
    $region29: #{tpu_custom_call.1} parent=1 // pred_fallthru
      _
    // Predicated region
    $region30: #{tpu_custom_call.1} parent=1 // pred_check
      _
    $region31: #{tpu_custom_call.1} parent=1 // pred_check_branch
      %928 = sbr.rel (0) target = $region33
    $region32: #{tpu_custom_call.1} parent=1 // pred_region
      %929 = dma.done [#allocation4], 256
    $region33: #{tpu_custom_call.1} parent=1 // pred_fallthru
      _
    // Predicated region
    $region34: #{tpu_custom_call.1} parent=1 // pred_check
      _
    $region35: #{tpu_custom_call.1} parent=1 // pred_check_branch
      %931 = sbr.rel (0) target = $region37
    $region36: #{tpu_custom_call.1} parent=1 // pred_region
      %932 = dma.done [#allocation9], 256
    $region37: #{tpu_custom_call.1} parent=1 // pred_fallthru
      _
    %933 = vsyncpa [#allocation3], 1
    %934 = vsyncpa [#allocation6], 1
    %935 = vsyncpa [#allocation4], 1
    %936 = vsyncpa [#allocation9], 1

</llo_original>
